<compile_context>
chip_gen: v7x
topology: tpu7x:2x2x1
jax: 0.10.0
libtpu: 0.0.40
codegen_flags: <defaults>
</compile_context>

<pallas_src>
import functools

import jax
import jax.numpy as jnp
from jax.experimental import pallas as pl
from jax.experimental.pallas import tpu as pltpu

_TARGET_BLOCK_BYTES = 4 * 1024 * 1024  # safe default for every generation (incl. v7x)

_CONST_CACHE = {}  # (mean, std, C, rows, dtype) -> (shift, scale) device arrays


# --------------------------------------------------------------------------- #
# Kernel body
# --------------------------------------------------------------------------- #
def _make_kernel(k):
    """Kernel normalizing k same-shape blocks in one grid step."""

    def kernel(shift_ref, scale_ref, *refs):
        # shift/scale: (row_blk, 1) columns, broadcast across the lane dim.
        shift = shift_ref[...]
        scale = scale_ref[...]
        for x_ref, o_ref in zip(refs[:k], refs[k:]):
            o_ref[...] = ((x_ref[...] - shift) * scale).astype(o_ref.dtype)

    return kernel


# --------------------------------------------------------------------------- #
# Chip-aware parameters & block selection
# --------------------------------------------------------------------------- #
@functools.lru_cache(maxsize=1)
def _tpu_params():
    """(num_tensorcores, per-step block-byte budget, vmem_limit_bytes)."""
    num_cores = 2                      # assume megacore-capable; harmless on 1-TC chips
    block_bytes = _TARGET_BLOCK_BYTES  # 4 MiB: safe on v7x's 64 MiB VMEM
    vmem_limit = 32 * 1024 * 1024
    try:
        info = pltpu.get_tpu_info()
        vmem_cap = getattr(info, "vmem_capacity_bytes", None)
        if vmem_cap is not None and vmem_cap >= 96 * 1024 * 1024:
            # v5e / v6e (128 MiB VMEM): bigger blocks amortize per-step overhead.
            block_bytes = 8 * 1024 * 1024
            vmem_limit = 64 * 1024 * 1024
        for attr in ("num_cores", "num_tensorcores", "tensorcore_count"):
            val = getattr(info, attr, None)
            if isinstance(val, int) and val > 0:
                num_cores = val
                break
    except Exception:
        pass  # conservative defaults above are safe everywhere
    return num_cores, block_bytes, vmem_limit


def _sublane_pack(itemsize):
    # 8 rows/vreg for f32, 16 for bf16/f16, 32 for int8/fp8.
    return max(8, 32 // max(1, int(itemsize)))


def _choose_blocks(rows, lanes, itemsize, target_bytes, num_cores):
    """Pick a lane-dense, sublane-aligned (row_blk, lane_blk) within target_bytes."""
    sub = _sublane_pack(itemsize)
    min_rows = rows if rows < sub else sub

    lane_budget = max(128, target_bytes // (min_rows * itemsize))
    if lanes <= lane_budget:
        lane_blk = lanes                          # full lane dim -> always legal
    else:
        # Prefer a multiple of 128 that divides lanes (no ragged j-block, fully
        # contiguous unmasked stores); otherwise keep full contiguous rows and
        # let the row block shrink instead.
        lane_blk = 0
        cand = (lane_budget // 128) * 128
        while cand >= 128:
            if lanes % cand == 0:
                lane_blk = cand
                break
            cand -= 128
        if lane_blk == 0:
            lane_blk = lanes

    rows_per_blk = max(min_rows, target_bytes // (lane_blk * itemsize))
    if rows_per_blk >= rows or rows <= sub:
        row_blk = rows                            # full row dim -> always legal
    else:
        row_blk = max(sub, (rows_per_blk // sub) * sub)

    # Megacore (v7x): ensure the "parallel" row axis has >= num_cores grid steps
    # whenever the slab is big enough to split, so both TensorCores get work.
    if num_cores > 1 and rows >= num_cores * sub:
        cap = max(sub, ((rows // num_cores) // sub) * sub)
        row_blk = min(row_blk, cap)

    return row_blk, lane_blk


# --------------------------------------------------------------------------- #
# Per-row constants (shift = mean[c], scale = 1/std[c]) with a tiny cache
# --------------------------------------------------------------------------- #
def _hashable_seq(vals):
    if isinstance(vals, (int, float)):
        return (float(vals),)
    if isinstance(vals, (list, tuple)) and all(isinstance(v, (int, float)) for v in vals):
        return tuple(float(v) for v in vals)
    return None


def _row_constants(mean, std, C, rows, dtype):
    mk, sk = _hashable_seq(mean), _hashable_seq(std)
    cache_key = None
    if mk is not None and sk is not None:
        cache_key = (mk, sk, int(C), int(rows), jnp.dtype(dtype).name)
        hit = _CONST_CACHE.get(cache_key)
        if hit is not None:
            return hit

    # Reciprocal in float32 for accuracy, cast to the input dtype afterwards.
    mean_c = jnp.broadcast_to(jnp.asarray(mean, jnp.float32).reshape(-1), (C,))
    inv_std_c = jnp.broadcast_to(1.0 / jnp.asarray(std, jnp.float32).reshape(-1), (C,))
    reps = rows // C
    shift = jnp.tile(mean_c, reps).reshape(rows, 1).astype(dtype)
    scale = jnp.tile(inv_std_c, reps).reshape(rows, 1).astype(dtype)

    if cache_key is not None:
        _CONST_CACHE[cache_key] = (shift, scale)
    return shift, scale


# --------------------------------------------------------------------------- #
# One fused launch per group of same-shape slabs
# --------------------------------------------------------------------------- #
def _normalize_group(xs, mean, std, C, inplace):
    """xs: list of (rows, lanes) slabs with identical shape/dtype -> list of outputs."""
    rows, lanes = xs[0].shape
    dtype = xs[0].dtype
    k = len(xs)

    shift, scale = _row_constants(mean, std, C, rows, dtype)
    num_cores, block_bytes, vmem_limit = _tpu_params()

    # Split the per-step block budget across the k fused tensors so the
    # double-buffered in+out working set stays ~constant regardless of k.
    sub = _sublane_pack(dtype.itemsize)
    per_tensor_target = max(128 * sub * dtype.itemsize, block_bytes // k)
    row_blk, lane_blk = _choose_blocks(rows, lanes, dtype.itemsize, per_tensor_target, num_cores)
    grid = (pl.cdiv(rows, row_blk), pl.cdiv(lanes, lane_blk))

    data_spec = pl.BlockSpec((row_blk, lane_blk), lambda i, j: (i, j))
    col_spec = pl.BlockSpec((row_blk, 1), lambda i, j: (i, 0))

    # torchvision's inplace=True maps to donating each input buffer to its output.
    aliases = {2 + i: i for i in range(k)} if inplace else {}

    outs = pl.pallas_call(
        _make_kernel(k),
        out_shape=tuple(jax.ShapeDtypeStruct((rows, lanes), dtype) for _ in range(k)),
        grid_spec=pltpu.PrefetchScalarGridSpec(
            num_scalar_prefetch=0,
            grid=grid,
            in_specs=[col_spec, col_spec] + [data_spec] * k,
            out_specs=tuple(data_spec for _ in range(k)),
        ),
        compiler_params=pltpu.CompilerParams(
            dimension_semantics=("parallel", "parallel"),
            vmem_limit_bytes=vmem_limit,
        ),
        input_output_aliases=aliases,
    )(shift, scale, *xs)

    return list(outs) if isinstance(outs, (tuple, list)) else [outs]


def normalize(data_dict, mean, std, inplace=False):
    """Pallas equivalent of Normalize.forward(data_dict)."""
    # TODO(synk): torchvision's inplace=True mutates tensors; JAX arrays are immutable,
    # so `inplace` only requests buffer donation via input_output_aliases.
    keys = list(data_dict.keys())
    prepared = {}
    groups = {}
    for key in keys:
        v = data_dict[key]
        if not jnp.issubdtype(v.dtype, jnp.floating):
            raise TypeError(f"Normalize expects float tensors, got {v.dtype} for '{key}'")
        if v.ndim == 3:
            C, H, W = v.shape
            N = 1
        elif v.ndim == 4:
            N, C, H, W = v.shape
        else:
            raise ValueError(f"Normalize expects CHW or NCHW tensors, got shape {v.shape}")
        rows, lanes = N * C, H * W
        x2 = v.reshape(rows, lanes)
        gkey = (rows, lanes, C, v.dtype)
        groups.setdefault(gkey, []).append(key)
        prepared[key] = (x2, v.shape)

    out = {}
    for (rows, lanes, C, _dt), member_keys in groups.items():
        xs = [prepared[k][0] for k in member_keys]
        ys = _normalize_group(xs, mean, std, C, inplace)
        for k, y in zip(member_keys, ys):
            out[k] = y.reshape(prepared[k][1])

    return {k: out[k] for k in keys}  # preserve original key order


# --------------------------------------------------------------------------- #
# Demo / correctness check
# --------------------------------------------------------------------------- #
if __name__ == "__main__":
    key = jax.random.PRNGKey(0)
    k_img, k_msk, k_lbl = jax.random.split(key, 3)

    N, C, H, W = 2, 4, 16, 16
    mean = [0.5, 0.4, 0.3, 0.2]
    std = [0.5, 0.25, 0.2, 0.1]

    data_dict = {
        "image": jax.random.uniform(k_img, (N, C, H, W), dtype=jnp.float32),
        "mask": jax.random.uniform(k_msk, (N, C, H, W), dtype=jnp.float32),
        "single": jax.random.uniform(k_lbl, (C, H, W), dtype=jnp.float32),  # CHW path
    }

    out_dict = normalize(data_dict, mean, std)
    out_dict = jax.tree_util.tree_map(jax.block_until_ready, out_dict)

    # Reference check against plain-JAX semantics of TF.normalize.
    mean_a = jnp.asarray(mean, jnp.float32)
    std_a = jnp.asarray(std, jnp.float32)
    for k, v in data_dict.items():
        shp = (1, C, 1, 1) if v.ndim == 4 else (C, 1, 1)
        expected = (v - mean_a.reshape(shp)) / std_a.reshape(shp)
        assert out_dict[k].shape == v.shape, f"shape mismatch in '{k}'"
        assert jnp.allclose(out_dict[k], expected, rtol=1e-5, atol=1e-5), f"mismatch in '{k}'"

    print("KERNEL_OK")
</pallas_src>

<mosaic_0001>
module attributes {stable_mosaic.version = 11 : i64} {
  func.func @kernel(%arg0: i32, %arg1: i32, %arg2: memref<8x1xf32, #tpu.memory_space<vmem>>, %arg3: memref<8x1xf32, #tpu.memory_space<vmem>>, %arg4: memref<8x256xf32, #tpu.memory_space<vmem>>, %arg5: memref<8x256xf32, #tpu.memory_space<vmem>>, %arg6: memref<8x256xf32, #tpu.memory_space<vmem>>, %arg7: memref<8x256xf32, #tpu.memory_space<vmem>>) attributes {dimension_semantics = [#tpu.dimension_semantics<parallel>, #tpu.dimension_semantics<parallel>], iteration_bounds = array<i64: 1, 1>, scalar_prefetch = 0 : i64, scratch_operands = 0 : i64, tpu.core_type = #tpu.core_type<tc>, window_params = [{transform_indices = @transform_0, window_bounds = array<i64: 8, 1>}, {transform_indices = @transform_1, window_bounds = array<i64: 8, 1>}, {transform_indices = @transform_2, window_bounds = array<i64: 8, 256>}, {transform_indices = @transform_3, window_bounds = array<i64: 8, 256>}, {transform_indices = @transform_4, window_bounds = array<i64: 8, 256>}, {transform_indices = @transform_5, window_bounds = array<i64: 8, 256>}]} {
    %c0 = arith.constant 0 : index
    %c0_0 = arith.constant 0 : index
    %0 = vector.load %arg2[%c0, %c0_0] : memref<8x1xf32, #tpu.memory_space<vmem>>, vector<8x1xf32>
    %c0_1 = arith.constant 0 : index
    %c0_2 = arith.constant 0 : index
    %1 = vector.load %arg3[%c0_1, %c0_2] : memref<8x1xf32, #tpu.memory_space<vmem>>, vector<8x1xf32>
    %c0_3 = arith.constant 0 : index
    %c0_4 = arith.constant 0 : index
    %2 = vector.load %arg4[%c0_3, %c0_4] : memref<8x256xf32, #tpu.memory_space<vmem>>, vector<8x256xf32>
    %3 = vector.broadcast %0 : vector<8x1xf32> to vector<8x256xf32>
    %4 = arith.subf %2, %3 : vector<8x256xf32>
    %5 = vector.broadcast %1 : vector<8x1xf32> to vector<8x256xf32>
    %6 = arith.mulf %4, %5 : vector<8x256xf32>
    %c0_5 = arith.constant 0 : index
    %c0_6 = arith.constant 0 : index
    %7 = vector.load %arg6[%c0_5, %c0_6] : memref<8x256xf32, #tpu.memory_space<vmem>>, vector<8x256xf32>
    tpu.vector_store %arg6[%c0_5, %c0_6], %6 {strides = array<i32>} : memref<8x256xf32, #tpu.memory_space<vmem>>, vector<8x256xf32>,
    %c0_7 = arith.constant 0 : index
    %c0_8 = arith.constant 0 : index
    %8 = vector.load %arg5[%c0_7, %c0_8] : memref<8x256xf32, #tpu.memory_space<vmem>>, vector<8x256xf32>
    %9 = vector.broadcast %0 : vector<8x1xf32> to vector<8x256xf32>
    %10 = arith.subf %8, %9 : vector<8x256xf32>
    %11 = vector.broadcast %1 : vector<8x1xf32> to vector<8x256xf32>
    %12 = arith.mulf %10, %11 : vector<8x256xf32>
    %c0_9 = arith.constant 0 : index
    %c0_10 = arith.constant 0 : index
    %13 = vector.load %arg7[%c0_9, %c0_10] : memref<8x256xf32, #tpu.memory_space<vmem>>, vector<8x256xf32>
    tpu.vector_store %arg7[%c0_9, %c0_10], %12 {strides = array<i32>} : memref<8x256xf32, #tpu.memory_space<vmem>>, vector<8x256xf32>,
    return
  }
  func.func @transform_0(%arg0: i32, %arg1: i32) -> (i32, i32) {
    %c0_i32 = arith.constant 0 : i32
    %c0_i32_0 = arith.constant 0 : i32
    return %arg0, %c0_i32 : i32, i32
  }
  func.func @transform_1(%arg0: i32, %arg1: i32) -> (i32, i32) {
    %c0_i32 = arith.constant 0 : i32
    %c0_i32_0 = arith.constant 0 : i32
    return %arg0, %c0_i32 : i32, i32
  }
  func.func @transform_2(%arg0: i32, %arg1: i32) -> (i32, i32) {
    %c0_i32 = arith.constant 0 : i32
    return %arg0, %arg1 : i32, i32
  }
  func.func @transform_3(%arg0: i32, %arg1: i32) -> (i32, i32) {
    %c0_i32 = arith.constant 0 : i32
    return %arg0, %arg1 : i32, i32
  }
  func.func @transform_4(%arg0: i32, %arg1: i32) -> (i32, i32) {
    %c0_i32 = arith.constant 0 : i32
    return %arg0, %arg1 : i32, i32
  }
  func.func @transform_5(%arg0: i32, %arg1: i32) -> (i32, i32) {
    %c0_i32 = arith.constant 0 : i32
    return %arg0, %arg1 : i32, i32
  }
}

</mosaic_0001>

<llo_original>
// kernel: tpu_custom_call.1
$region0: #{tpu_custom_call.1}
  #allocation0 [shape = 'u32[]', space=smem, size = 0x4, offset = 0x4, fixed_abs, tag = 'smem constant byte address 0x4 - core index']
  #allocation1 [shape = 'u32[144,128]{1,0:T(1,128)}', space=vmem, size = 0x12000, scoped, tag = 'internal scratch']
  %s0 = inlined_call_operand.vmem [shape: f32[8,1], index: 0, kind: input, shape index: {}]
  %s1 = inlined_call_operand.vmem [shape: f32[8,1], index: 1, kind: input, shape index: {}]
  %s2 = inlined_call_operand.vmem [shape: f32[8,256], index: 2, kind: input, shape index: {}]
  %s3 = inlined_call_operand.hbm [shape: f32[8,256], index: 3, kind: input, shape index: {}]
  %s4 = inlined_call_operand.hbm [shape: f32[8,256], index: 4, kind: output, shape index: {0}]
  %s5 = inlined_call_operand.hbm [shape: f32[8,256], index: 5, kind: output, shape index: {1}]
  %6 = xla_tuple %s4, %s5
  %s7 = sld [smem:[#allocation0]]
  $region38: #{tpu_custom_call.1} parent=0
    _
  %s9 = ssub.s32 1, %s7
  %s10 = scalar_select 0, %s9, %s7
  $region1: #{tpu_custom_call.1} parent=0
    #allocation2 [shape = 'u8[8192]{0}', space=vmem, size = 0x2000, scoped, tag = 'input window, operand 3, single buffered']
    #allocation3 [shape = 's32[1]{0}', space=sflag, size = 0x4, scoped, tag = 'scoped memory for tpu_custom_call.1']
    #allocation4 [shape = 's32[1]{0}', space=sflag, size = 0x4, scoped, tag = 'scoped memory for tpu_custom_call.1']
    #allocation5 [shape = 'u8[8192]{0}', space=vmem, size = 0x2000, scoped, tag = 'output window, operand 0, single buffered']
    #allocation6 [shape = 'u8[8192]{0}', space=vmem, size = 0x2000, scoped, tag = 'output window, operand 1, single buffered']
    #allocation7 [shape = 's32[1]{0}', space=sflag, size = 0x4, scoped, tag = 'scoped memory for tpu_custom_call.1']
    %11 = vsyncpa [#allocation3], 0
    %12 = vsyncpa [#allocation4], 0
    %13 = vsyncpa [#allocation7], 0
    // Predicated region
    $region2: #{tpu_custom_call.1} parent=1 // pred_check
      _
    $region3: #{tpu_custom_call.1} parent=1 // pred_check_branch
      %15 = sbr.rel (0) target = $region5
    $region4: #{tpu_custom_call.1} parent=1 // pred_region
      _
    $region5: #{tpu_custom_call.1} parent=1 // pred_fallthru
      _
    // Predicated region
    $region6: #{tpu_custom_call.1} parent=1 // pred_check
      _
    $region7: #{tpu_custom_call.1} parent=1 // pred_check_branch
      %17 = sbr.rel (0) target = $region9
    $region8: #{tpu_custom_call.1} parent=1 // pred_region
      _
    $region9: #{tpu_custom_call.1} parent=1 // pred_fallthru
      _
    // Predicated region
    $region10: #{tpu_custom_call.1} parent=1 // pred_check
      _
    $region11: #{tpu_custom_call.1} parent=1 // pred_check_branch
      %19 = sbr.rel (0) target = $region13
    $region12: #{tpu_custom_call.1} parent=1 // pred_region
      _
    $region13: #{tpu_custom_call.1} parent=1 // pred_fallthru
      _
    // Predicated region
    $region14: #{tpu_custom_call.1} parent=1 // pred_check
      _
    $region15: #{tpu_custom_call.1} parent=1 // pred_check_branch
      %21 = sbr.rel (0) target = $region17
    $region16: #{tpu_custom_call.1} parent=1 // pred_region
      %s23 = ssub.s32 256, 256
      %24 = vsyncadd [#allocation3], %s23
      %s26 = sshll.u32 [#allocation2], 4
      %s27 = int_to_ptr.vmem [resolvable:$true] %s26
      %29 = dma.hbm_to_vmem [thread:$0]  %s3, 256, %s27, [#allocation3]
    $region17: #{tpu_custom_call.1} parent=1 // pred_fallthru
      _
    // Predicated region
    $region18: #{tpu_custom_call.1} parent=1 // pred_check
      _
    $region19: #{tpu_custom_call.1} parent=1 // pred_check_branch
      %31 = sbr.rel (0) target = $region21
    $region20: #{tpu_custom_call.1} parent=1 // pred_region
      %32 = dma.done [#allocation3], 256
    $region21: #{tpu_custom_call.1} parent=1 // pred_fallthru
      _
    %v33 = vld [vmem:[%s0] sm:$0xff]
    %v34 = vld [vmem:[%s1] sm:$0xff]
    %v35 = vld [vmem:[%s2] sm:$0xff]
    %v36 = vld [vmem:[%s2 + $0x8] sm:$0xff]
    %38 = vset.pattern.permute.xlu0 0
    %39 = vperm.xlu0 %38, %v33
    %v40 = vpop.permute.xlu0 %39
    %v42 = vsub.f32 %v35, %v40
    %v43 = vsub.f32 %v36, %v40
    %45 = vset.pattern.permute.xlu0 0
    %46 = vperm.xlu0 %45, %v34
    %v47 = vpop.permute.xlu0 %46
    %v49 = vmul.f32 %v42, %v47
    %v50 = vmul.f32 %v43, %v47
    %51 = vst [vmem:[#allocation5] sm:$0xff] %v49
    %52 = vst [vmem:[#allocation5 + $0x8] sm:$0xff] %v50
    %v53 = vld [vmem:[#allocation2] sm:$0xff]
    %v54 = vld [vmem:[#allocation2 + $0x8] sm:$0xff]
    %v55 = vsub.f32 %v53, %v40
    %v56 = vsub.f32 %v54, %v40
    %v57 = vmul.f32 %v55, %v47
    %v58 = vmul.f32 %v56, %v47
    %59 = vst [vmem:[#allocation6] sm:$0xff] %v57
    %60 = vst [vmem:[#allocation6 + $0x8] sm:$0xff] %v58
    // Predicated region
    $region22: #{tpu_custom_call.1} parent=1 // pred_check
      _
    $region23: #{tpu_custom_call.1} parent=1 // pred_check_branch
      %62 = sbr.rel (0) target = $region25
    $region24: #{tpu_custom_call.1} parent=1 // pred_region
      %s64 = ssub.s32 256, 256
      %65 = vsyncadd [#allocation4], %s64
      %s67 = sshll.u32 [#allocation5], 4
      %s68 = int_to_ptr.vmem [resolvable:$true] %s67
      %70 = dma.vmem_to_hbm [thread:$0]  %s68, 256, %s4, [#allocation4]
    $region25: #{tpu_custom_call.1} parent=1 // pred_fallthru
      _
    // Predicated region
    $region26: #{tpu_custom_call.1} parent=1 // pred_check
      _
    $region27: #{tpu_custom_call.1} parent=1 // pred_check_branch
      %72 = sbr.rel (0) target = $region29
    $region28: #{tpu_custom_call.1} parent=1 // pred_region
      %s74 = ssub.s32 256, 256
      %75 = vsyncadd [#allocation7], %s74
      %s77 = sshll.u32 [#allocation6], 4
      %s78 = int_to_ptr.vmem [resolvable:$true] %s77
      %80 = dma.vmem_to_hbm [thread:$0]  %s78, 256, %s5, [#allocation7]
    $region29: #{tpu_custom_call.1} parent=1 // pred_fallthru
      _
    // Predicated region
    $region30: #{tpu_custom_call.1} parent=1 // pred_check
      _
    $region31: #{tpu_custom_call.1} parent=1 // pred_check_branch
      %82 = sbr.rel (0) target = $region33
    $region32: #{tpu_custom_call.1} parent=1 // pred_region
      %83 = dma.done [#allocation4], 256
    $region33: #{tpu_custom_call.1} parent=1 // pred_fallthru
      _
    // Predicated region
    $region34: #{tpu_custom_call.1} parent=1 // pred_check
      _
    $region35: #{tpu_custom_call.1} parent=1 // pred_check_branch
      %85 = sbr.rel (0) target = $region37
    $region36: #{tpu_custom_call.1} parent=1 // pred_region
      %86 = dma.done [#allocation7], 256
    $region37: #{tpu_custom_call.1} parent=1 // pred_fallthru
      _
    %87 = vsyncpa [#allocation3], 1
    %88 = vsyncpa [#allocation4], 1
    %89 = vsyncpa [#allocation7], 1

</llo_original>
